<compile_context>
chip_gen: v7x
topology: tpu7x:2x2x1
jax: 0.10.0
libtpu: 0.0.40
codegen_flags: <defaults>
</compile_context>

<pallas_src>
import functools

import jax
import jax.numpy as jnp
from jax.experimental import pallas as pl
from jax.experimental.pallas import tpu as pltpu


def _round_up(v, m):
    return (v + m - 1) // m * m


def _gcn_kernel(adj_ref, x_lane_ref, x_col_ref, params_ref, out_ref, *,
                tile_rows, n_valid, tiled):
    # adj_ref:    [tile_rows, n_src_pad]  mean-normalized adjacency (dst-major tile)
    # x_lane_ref: [1, n_src_pad]          node features, lane-major (src axis)
    # x_col_ref:  [tile_rows, 1]          node features for this dst tile, sublane-major
    # params_ref: [3, H]                  rows: w_l, w_r, b_l (each [1, H])
    # out_ref:    [1, H]                  partial max over this dst tile
    row0 = pl.program_id(0) * tile_rows if tiled else 0

    # mean aggregation: VPU multiply + XLU lane reduce (no MXU)
    agg = jnp.sum(adj_ref[...] * x_lane_ref[...], axis=1, keepdims=True)  # [T, 1]

    p = params_ref[...]                      # [3, H]
    w_l = p[0:1, :]
    w_r = p[1:2, :]
    b_l = p[2:3, :]

    # SAGE linear layers as rank-1 broadcast multiplies on the VPU
    h = agg * w_l + x_col_ref[...] * w_r + b_l                            # [T, H]
    # dropout(p=0.2, training=False) -> identity

    # mask padded dst rows before the max pool
    row_ids = jax.lax.broadcasted_iota(jnp.int32, (tile_rows, 1), 0) + row0
    h = jnp.where(row_ids < n_valid, h, -jnp.inf)

    out_ref[...] = jnp.max(h, axis=0, keepdims=True)   # global max pool (partial)


def gcn_forward(x, edge_index, w_l, w_r, b_l, *, max_tile_rows=512):
    """x: [N, 1] float32, edge_index: [2, E] int32 (row0=src, row1=dst).
    w_l, w_r, b_l: [1, H] (SAGEConv lin_l weight^T, lin_r weight^T, lin_l bias)."""
    n = x.shape[0]
    hidden = w_l.shape[1]

    # ---- glue (plain JAX): build mean-normalized dense adjacency [N_dst, N_src] ----
    src, dst = edge_index[0], edge_index[1]
    adj = jnp.zeros((n, n), dtype=jnp.float32).at[dst, src].add(1.0)
    deg = jnp.sum(adj, axis=1, keepdims=True)
    adj = adj / jnp.where(deg > 0, deg, 1.0)  # isolated nodes -> zero aggregation

    # ---- padding / tiling decisions ----
    n_src_pad = _round_up(n, 128)                              # lane axis
    # cap adj tile so 2x double-buffering stays around <=16 MiB (v7x 64 MiB VMEM safe)
    fit_rows = max(8, (8 * 1024 * 1024) // (n_src_pad * 4) // 8 * 8)
    tile_rows = max(8, min(max_tile_rows, fit_rows) // 8 * 8)
    n_dst_pad8 = _round_up(n, 8)
    if n_dst_pad8 <= tile_rows:
        tile_rows = n_dst_pad8
        num_tiles = 1
    else:
        num_tiles = pl.cdiv(n, tile_rows)
    n_dst_pad = num_tiles * tile_rows

    # padded operands (zero padding: padded src cols contribute 0; padded dst rows masked)
    adj_p = jnp.zeros((n_dst_pad, n_src_pad), jnp.float32).at[:n, :n].set(adj)
    x_lane = jnp.zeros((1, n_src_pad), jnp.float32).at[0, :n].set(x[:, 0])
    x_col = jnp.zeros((n_dst_pad, 1), jnp.float32).at[:n, :].set(x)
    params = jnp.concatenate([w_l, w_r, b_l], axis=0)          # [3, H], single DMA

    if num_tiles == 1:
        # small graph: no grid, single full-array blocks, no pipeline bookkeeping
        kernel = functools.partial(_gcn_kernel, tile_rows=tile_rows,
                                   n_valid=n, tiled=False)
        return pl.pallas_call(
            kernel,
            out_shape=jax.ShapeDtypeStruct((1, hidden), jnp.float32),
        )(adj_p, x_lane, x_col, params)

    # larger graph: tile over destination nodes, 'parallel' grid axis (megacore),
    # per-tile partial max reduced in the wrapper
    kernel = functools.partial(_gcn_kernel, tile_rows=tile_rows,
                               n_valid=n, tiled=True)
    partials = pl.pallas_call(
        kernel,
        out_shape=jax.ShapeDtypeStruct((num_tiles, hidden), jnp.float32),
        grid=(num_tiles,),
        in_specs=[
            pl.BlockSpec((tile_rows, n_src_pad), lambda i: (i, 0)),
            pl.BlockSpec((1, n_src_pad), lambda i: (0, 0)),
            pl.BlockSpec((tile_rows, 1), lambda i: (i, 0)),
            pl.BlockSpec((3, hidden), lambda i: (0, 0)),
        ],
        out_specs=pl.BlockSpec((1, hidden), lambda i: (i, 0)),
        compiler_params=pltpu.CompilerParams(dimension_semantics=("parallel",)),
    )(adj_p, x_lane, x_col, params)
    return jnp.max(partials, axis=0, keepdims=True)


def gcn_reference(x, edge_index, w_l, w_r, b_l):
    """Pure-JAX reference (PyG SAGEConv mean agg + eval dropout + global max pool)."""
    n = x.shape[0]
    src, dst = edge_index[0], edge_index[1]
    adj = jnp.zeros((n, n), jnp.float32).at[dst, src].add(1.0)
    deg = jnp.sum(adj, axis=1, keepdims=True)
    adj = adj / jnp.where(deg > 0, deg, 1.0)
    h = (adj @ x) @ w_l + x @ w_r + b_l
    return jnp.max(h, axis=0, keepdims=True)


if __name__ == "__main__":
    key = jax.random.PRNGKey(0)

    def run_case(n, e, hidden, max_tile_rows, case_key):
        k_x, k_e, k_wl, k_wr, k_b = jax.random.split(case_key, 5)
        x = jax.random.normal(k_x, (n, 1), dtype=jnp.float32)
        edge_index = jax.random.randint(k_e, (2, e), 0, n, dtype=jnp.int32)
        # SAGEConv(1, hidden): lin_l weight [H,1]+bias, lin_r weight [H,1];
        # stored transposed as [1, H] for broadcast math in the kernel.
        w_l = jax.random.normal(k_wl, (1, hidden), dtype=jnp.float32) * 0.1
        w_r = jax.random.normal(k_wr, (1, hidden), dtype=jnp.float32) * 0.1
        b_l = jax.random.normal(k_b, (1, hidden), dtype=jnp.float32) * 0.01

        out = gcn_forward(x, edge_index, w_l, w_r, b_l, max_tile_rows=max_tile_rows)
        out = jax.block_until_ready(out)

        ref = gcn_reference(x, edge_index, w_l, w_r, b_l)
        assert out.shape == (1, hidden), out.shape
        assert jnp.allclose(out, ref, atol=1e-5, rtol=1e-4), (out, ref)
        return out

    k1, k2 = jax.random.split(key)
    run_case(16, 40, 32, 512, k1)    # small graph: grid-free single-block path
    run_case(200, 800, 32, 64, k2)   # larger graph: tiled 'parallel' dst-grid path

    print("KERNEL_OK")
</pallas_src>

<mosaic_0001>
module attributes {stable_mosaic.version = 11 : i64} {
  func.func @_gcn_kernel(%arg0: memref<16x128xf32, #tpu.memory_space<vmem>>, %arg1: memref<1x128xf32, #tpu.memory_space<vmem>>, %arg2: memref<16x1xf32, #tpu.memory_space<vmem>>, %arg3: memref<3x32xf32, #tpu.memory_space<vmem>>, %arg4: memref<1x32xf32, #tpu.memory_space<vmem>>) attributes {dimension_semantics = [], scalar_prefetch = 0 : i64, scratch_operands = 0 : i64, tpu.core_type = #tpu.core_type<tc>} {
    %c0 = arith.constant 0 : index
    %c0_0 = arith.constant 0 : index
    %0 = vector.load %arg0[%c0, %c0_0] : memref<16x128xf32, #tpu.memory_space<vmem>>, vector<16x128xf32>
    %c0_1 = arith.constant 0 : index
    %c0_2 = arith.constant 0 : index
    %1 = vector.load %arg1[%c0_1, %c0_2] : memref<1x128xf32, #tpu.memory_space<vmem>>, vector<1x128xf32>
    %2 = vector.broadcast %1 : vector<1x128xf32> to vector<16x128xf32>
    %3 = arith.mulf %0, %2 : vector<16x128xf32>
    %cst = arith.constant dense<0.000000e+00> : vector<16xf32>
    %4 = vector.multi_reduction <add>, %3, %cst [1] : vector<16x128xf32> to vector<16xf32>
    %5 = vector.shape_cast %4 : vector<16xf32> to vector<16x1xf32>
    %c0_3 = arith.constant 0 : index
    %c0_4 = arith.constant 0 : index
    %6 = vector.load %arg3[%c0_3, %c0_4] : memref<3x32xf32, #tpu.memory_space<vmem>>, vector<3x32xf32>
    %7 = vector.extract_strided_slice %6 {offsets = [0, 0], sizes = [1, 32], strides = [1, 1]} : vector<3x32xf32> to vector<1x32xf32>
    %8 = vector.extract_strided_slice %6 {offsets = [1, 0], sizes = [1, 32], strides = [1, 1]} : vector<3x32xf32> to vector<1x32xf32>
    %9 = vector.extract_strided_slice %6 {offsets = [2, 0], sizes = [1, 32], strides = [1, 1]} : vector<3x32xf32> to vector<1x32xf32>
    %10 = vector.broadcast %5 : vector<16x1xf32> to vector<16x32xf32>
    %11 = vector.broadcast %7 : vector<1x32xf32> to vector<16x32xf32>
    %12 = arith.mulf %10, %11 : vector<16x32xf32>
    %c0_5 = arith.constant 0 : index
    %c0_6 = arith.constant 0 : index
    %13 = vector.load %arg2[%c0_5, %c0_6] : memref<16x1xf32, #tpu.memory_space<vmem>>, vector<16x1xf32>
    %14 = vector.broadcast %13 : vector<16x1xf32> to vector<16x32xf32>
    %15 = vector.broadcast %8 : vector<1x32xf32> to vector<16x32xf32>
    %16 = arith.mulf %14, %15 : vector<16x32xf32>
    %17 = arith.addf %12, %16 : vector<16x32xf32>
    %18 = vector.broadcast %9 : vector<1x32xf32> to vector<16x32xf32>
    %19 = arith.addf %17, %18 : vector<16x32xf32>
    %20 = tpu.iota {dimensions = array<i32: 0>} : vector<16x1xi32>
    %c0_i32 = arith.constant 0 : i32
    %21 = vector.broadcast %c0_i32 : i32 to vector<16x1xi32>
    %22 = arith.addi %20, %21 : vector<16x1xi32>
    %c16_i32 = arith.constant 16 : i32
    %23 = vector.broadcast %c16_i32 : i32 to vector<16x1xi32>
    %24 = arith.cmpi slt, %22, %23 : vector<16x1xi32>
    %cst_7 = arith.constant 0xFF800000 : f32
    %25 = vector.shape_cast %24 : vector<16x1xi1> to vector<16x1xi1>
    %26 = vector.broadcast %25 : vector<16x1xi1> to vector<16x32xi1>
    %27 = vector.broadcast %cst_7 : f32 to vector<16x32xf32>
    %28 = arith.select %26, %19, %27 : vector<16x32xi1>, vector<16x32xf32>
    %cst_8 = arith.constant dense<0xFF800000> : vector<32xf32>
    %29 = vector.multi_reduction <maximumf>, %28, %cst_8 [0] : vector<16x32xf32> to vector<32xf32>
    %30 = vector.shape_cast %29 : vector<32xf32> to vector<1x32xf32>
    %c0_9 = arith.constant 0 : index
    %c0_10 = arith.constant 0 : index
    %31 = vector.load %arg4[%c0_9, %c0_10] : memref<1x32xf32, #tpu.memory_space<vmem>>, vector<1x32xf32>
    tpu.vector_store %arg4[%c0_9, %c0_10], %30 {strides = array<i32>} : memref<1x32xf32, #tpu.memory_space<vmem>>, vector<1x32xf32>,
    return
  }
}

</mosaic_0001>

<llo_original>
// kernel: tpu_custom_call.1
$region0: #{tpu_custom_call.1}
  #allocation0 [shape = 'u32[]', space=smem, size = 0x4, offset = 0x4, fixed_abs, tag = 'smem constant byte address 0x4 - core index']
  #allocation1 [shape = 'u32[144,128]{1,0:T(1,128)}', space=vmem, size = 0x12000, scoped, tag = 'internal scratch']
  %s0 = inlined_call_operand.vmem [shape: f32[16,128], index: 0, kind: input, shape index: {}]
  %s1 = inlined_call_operand.hbm [shape: f32[1,128], index: 1, kind: input, shape index: {}]
  %s2 = inlined_call_operand.vmem [shape: f32[16,1], index: 2, kind: input, shape index: {}]
  %s3 = inlined_call_operand.vmem [shape: f32[3,32], index: 3, kind: input, shape index: {}]
  %s4 = inlined_call_operand.hbm [shape: f32[1,32], index: 4, kind: output, shape index: {}]
  %s5 = sld [smem:[#allocation0]]
  $region30: #{tpu_custom_call.1} parent=0
    _
  %s7 = ssub.s32 1, %s5
  %s8 = scalar_select 0, %s7, %s5
  $region1: #{tpu_custom_call.1} parent=0
    #allocation2 [shape = 'u8[512]{0}', space=vmem, size = 0x400, scoped, tag = 'input window, operand 1, single buffered']
    #allocation3 [shape = 's32[1]{0}', space=sflag, size = 0x4, scoped, tag = 'scoped memory for tpu_custom_call.1']
    #allocation4 [shape = 's32[1]{0}', space=sflag, size = 0x4, scoped, tag = 'scoped memory for tpu_custom_call.1']
    #allocation5 [shape = 'u8[512]{0}', space=vmem, size = 0x400, scoped, tag = 'output window, operand 0, single buffered']
    %9 = vsyncpa [#allocation3], 0
    %10 = vsyncpa [#allocation4], 0
    // Predicated region
    $region2: #{tpu_custom_call.1} parent=1 // pred_check
      _
    $region3: #{tpu_custom_call.1} parent=1 // pred_check_branch
      %12 = sbr.rel (0) target = $region5
    $region4: #{tpu_custom_call.1} parent=1 // pred_region
      _
    $region5: #{tpu_custom_call.1} parent=1 // pred_fallthru
      _
    // Predicated region
    $region6: #{tpu_custom_call.1} parent=1 // pred_check
      _
    $region7: #{tpu_custom_call.1} parent=1 // pred_check_branch
      %14 = sbr.rel (0) target = $region9
    $region8: #{tpu_custom_call.1} parent=1 // pred_region
      %s16 = ssub.s32 16, 16
      %17 = vsyncadd [#allocation3], %s16
      %s19 = sshll.u32 [#allocation2], 4
      %s20 = int_to_ptr.vmem [resolvable:$true] %s19
      %22 = dma.hbm_to_vmem [thread:$0]  %s1, 16, %s20, [#allocation3]
    $region9: #{tpu_custom_call.1} parent=1 // pred_fallthru
      _
    // Predicated region
    $region10: #{tpu_custom_call.1} parent=1 // pred_check
      _
    $region11: #{tpu_custom_call.1} parent=1 // pred_check_branch
      %24 = sbr.rel (0) target = $region13
    $region12: #{tpu_custom_call.1} parent=1 // pred_region
      _
    $region13: #{tpu_custom_call.1} parent=1 // pred_fallthru
      _
    // Predicated region
    $region14: #{tpu_custom_call.1} parent=1 // pred_check
      _
    $region15: #{tpu_custom_call.1} parent=1 // pred_check_branch
      %26 = sbr.rel (0) target = $region17
    $region16: #{tpu_custom_call.1} parent=1 // pred_region
      _
    $region17: #{tpu_custom_call.1} parent=1 // pred_fallthru
      _
    // Predicated region
    $region18: #{tpu_custom_call.1} parent=1 // pred_check
      _
    $region19: #{tpu_custom_call.1} parent=1 // pred_check_branch
      %28 = sbr.rel (0) target = $region21
    $region20: #{tpu_custom_call.1} parent=1 // pred_region
      %29 = dma.done [#allocation3], 16
    $region21: #{tpu_custom_call.1} parent=1 // pred_fallthru
      _
    %v30 = vld [vmem:[%s0] sm:$0xff]
    %v31 = vld [vmem:[%s0 + $0x8] sm:$0xff]
    %v32 = vld [vmem:[#allocation2] sm:$0x1]
    %v34 = vlaneseq
    %v35 = vshrl.u32 %v34, 7
    %v36 = vsub.s32 0, %v35
    %v37 = vrot.slane %v32, %v36
    %v39 = vmul.f32 %v30, %v37
    %v40 = vmul.f32 %v31, %v37
    %41 = vadd.xlane.f32.xlu0 %v39
    %v42 = vpop.xlane.xlu0 %41
    %43 = vadd.xlane.f32.xlu0 %v40
    %v44 = vpop.xlane.xlu0 %43
    %v45 = vld [vmem:[%s3] sm:$0x7]
    %v46 = vlaneseq
    %v47 = vshrl.u32 %v46, 7
    %v48 = vsub.s32 0, %v47
    %v49 = vrot.slane %v45, %v48
    %v50 = vmul.f32 %v42, %v49
    %v51 = vmul.f32 %v44, %v49
    %v52 = vld [vmem:[%s2] sm:$0xff]
    %v53 = vld [vmem:[%s2 + $0x8] sm:$0xff]
    %55 = vset.pattern.permute.xlu0 0
    %56 = vperm.xlu0 %55, %v52
    %v57 = vpop.permute.xlu0 %56
    %60 = vset.pattern.permute.xlu0 0
    %61 = vperm.xlu0 %60, %v53
    %v62 = vpop.permute.xlu0 %61
    %v64 = vlaneseq
    %v65 = vshrl.u32 %v64, 7
    %v66 = vsub.s32 1, %v65
    %v67 = vrot.slane %v45, %v66
    %v68 = vmul.f32 %v57, %v67
    %v69 = vmul.f32 %v62, %v67
    %v70 = vadd.f32 %v50, %v68
    %v71 = vadd.f32 %v51, %v69
    %v72 = vlaneseq
    %v73 = vshrl.u32 %v72, 7
    %v74 = vsub.s32 2, %v73
    %v75 = vrot.slane %v45, %v74
    %v76 = vadd.f32 %v70, %v75
    %v77 = vadd.f32 %v71, %v75
    %v78 = vlaneseq
    %v79 = vshrl.u32 %v78, 7
    %v80 = vadd.s32 %v79, 8
    %vm81 = vcmp.lt.s32.totalorder %v79, 16
    %vm82 = vcmp.lt.s32.totalorder %v80, 16
    %v83 = vsel %vm81, 1, 0
    %v84 = vsel %vm82, 1, 0
    %vm85 = vcmp.eq.s32.totalorder %v83, 1
    %vm86 = vcmp.eq.s32.totalorder %v84, 1
    %v87 = vsel %vm85, %v76, -inf
    %v88 = vsel %vm86, %v77, -inf
    %vm89 = vcmask 261120
    %v90 = vsel %vm89, %v87, -inf
    %v91 = vsel %vm89, %v88, -inf
    %v92 = vmax.f32 %v90, %v91
    %v93 = vrot.slane %v92, 4
    %v94 = vmax.f32 %v92, %v93
    %v95 = vrot.slane %v94, 2
    %v96 = vmax.f32 %v94, %v95
    %v97 = vrot.slane %v96, 1
    %v98 = vmax.f32 %v96, %v97
    %vm99 = vcmask 253952
    %100 = vst.msk [vmem:[#allocation5] sm:$0x1] %vm99, %v98
    // Predicated region
    $region22: #{tpu_custom_call.1} parent=1 // pred_check
      _
    $region23: #{tpu_custom_call.1} parent=1 // pred_check_branch
      %102 = sbr.rel (0) target = $region25
    $region24: #{tpu_custom_call.1} parent=1 // pred_region
      %s104 = ssub.s32 16, 16
      %105 = vsyncadd [#allocation4], %s104
      %s107 = sshll.u32 [#allocation5], 4
      %s108 = int_to_ptr.vmem [resolvable:$true] %s107
      %110 = dma.vmem_to_hbm [thread:$0]  %s108, 16, %s4, [#allocation4]
    $region25: #{tpu_custom_call.1} parent=1 // pred_fallthru
      _
    // Predicated region
    $region26: #{tpu_custom_call.1} parent=1 // pred_check
      _
    $region27: #{tpu_custom_call.1} parent=1 // pred_check_branch
      %112 = sbr.rel (0) target = $region29
    $region28: #{tpu_custom_call.1} parent=1 // pred_region
      %113 = dma.done [#allocation4], 16
    $region29: #{tpu_custom_call.1} parent=1 // pred_fallthru
      _
    %114 = vsyncpa [#allocation3], 1
    %115 = vsyncpa [#allocation4], 1

</llo_original>
